<compile_context>
chip_gen: v6e
topology: v6e:2x2x1
jax: 0.10.0
libtpu: 0.0.40
codegen_flags: <defaults>
</compile_context>

<pallas_src>
import jax
import jax.numpy as jnp
import numpy as np
from jax.experimental import pallas as pl
from jax.experimental.pallas import tpu as pltpu


def _scaling_kernel(x_ref, shift_ref, inv_scale_ref, o_ref):
    # One lane-dense (tile_r, tile_hw) tile per grid step.  shift / inv_scale
    # are (tile_r, 1) and broadcast across lanes: one vsub + one vmul per vreg.
    x = x_ref[...].astype(jnp.float32)
    o_ref[...] = ((x - shift_ref[...]) * inv_scale_ref[...]).astype(o_ref.dtype)


def _round_down(a, b):
    return a // b * b


def _default_tile_bytes():
    """Per-buffer tile byte budget, kept under each generation's scoped VMEM
    default (2x double-buffered input + output + tiny param blocks)."""
    try:
        kind = jax.devices()[0].device_kind.lower()
    except Exception:
        return 3 << 20
    if ("v6" in kind) or ("v7" in kind) or ("7x" in kind):
        return 6 << 20  # ~24 MiB double-buffered, inside the 32 MiB default
    return 3 << 20      # ~12 MiB double-buffered, inside v5e's 16 MiB default


def scaling_layer(x, shift, scale, *, target_tile_bytes=None):
    """(x - shift[None,:,None,None]) / scale[None,:,None,None]; x is NCHW."""
    N, C, H, W = x.shape
    assert shift.shape == (C,) and scale.shape == (C,)
    dtype = x.dtype
    itemsize = jnp.dtype(dtype).itemsize
    if target_tile_bytes is None:
        target_tile_bytes = _default_tile_bytes()

    R = N * C
    HW = H * W

    # Lane-dense flattening: (N, C, H, W) -> (N*C, H*W).  Bitcast for the
    # default row-major NCHW layout (no HBM copy).
    xr = x.reshape(R, HW)

    # Native sublane packing: 8 rows (32-bit), 16 (bf16/f16), 32 (int8/fp8).
    row_quantum = 8 * max(1, 4 // itemsize)

    # --- tile selection: prefer contiguous full-HW row slabs ---
    if row_quantum * HW * itemsize <= target_tile_bytes:
        tile_hw = HW  # full rows: contiguous DMA, lane dim == full array dim
        rows_budget = target_tile_bytes // (HW * itemsize)
        tile_r = R if rows_budget >= R else _round_down(rows_budget, row_quantum)
    else:
        tile_r = min(R, row_quantum)
        lanes_budget = target_tile_bytes // (tile_r * itemsize)
        tile_hw = HW if lanes_budget >= HW else max(128, _round_down(lanes_budget, 128))

    grid_r = pl.cdiv(R, tile_r)
    grid_hw = pl.cdiv(HW, tile_hw)

    # Per-row parameters: row = n*C + c  ->  shift[c], 1/scale[c].
    shift_rows = jnp.tile(shift.astype(jnp.float32), N).reshape(R, 1)
    inv_scale_rows = jnp.tile((1.0 / scale).astype(jnp.float32), N).reshape(R, 1)

    if grid_r == 1:
        # Single row block: collapse to a 1-D grid over the hw axis.
        grid = (grid_hw,)
        x_spec = pl.BlockSpec((tile_r, tile_hw), lambda hw: (0, hw))
        p_spec = pl.BlockSpec((tile_r, 1), lambda hw: (0, 0))
        o_spec = pl.BlockSpec((tile_r, tile_hw), lambda hw: (0, hw))
        semantics = ("parallel",)
    else:
        # hw innermost: the (tile_r, 1) param blocks keep the same block index
        # across the inner loop, so Pallas skips their re-fetch; consecutive
        # x tiles are adjacent in HBM.
        grid = (grid_r, grid_hw)
        x_spec = pl.BlockSpec((tile_r, tile_hw), lambda r, hw: (r, hw))
        p_spec = pl.BlockSpec((tile_r, 1), lambda r, hw: (r, 0))
        o_spec = pl.BlockSpec((tile_r, tile_hw), lambda r, hw: (r, hw))
        semantics = ("parallel", "parallel")

    out = pl.pallas_call(
        _scaling_kernel,
        out_shape=jax.ShapeDtypeStruct((R, HW), dtype),
        grid=grid,
        in_specs=[x_spec, p_spec, p_spec],
        out_specs=o_spec,
        compiler_params=pltpu.CompilerParams(dimension_semantics=semantics),
    )(xr, shift_rows, inv_scale_rows)

    return out.reshape(N, C, H, W)


if __name__ == "__main__":
    # Buffers from the PyTorch module's __init__ ((1,3,1,1) in torch; stored
    # flat as (3,) here and expanded per-row in the wrapper).
    shift = jnp.array([-0.030, -0.088, -0.188], dtype=jnp.float32)
    scale = jnp.array([0.458, 0.448, 0.450], dtype=jnp.float32)

    # Small deterministic NCHW input; C must be 3 for this module.
    key = jax.random.PRNGKey(0)
    x = jax.random.normal(key, (2, 3, 16, 16), dtype=jnp.float32)

    out = jax.block_until_ready(scaling_layer(x, shift, scale))

    # Pure-JAX reference (same semantics as the PyTorch forward).
    ref = (x - shift[None, :, None, None]) / scale[None, :, None, None]
    np.testing.assert_allclose(np.asarray(out), np.asarray(ref), rtol=1e-5, atol=1e-6)

    print("KERNEL_OK")
</pallas_src>

<mosaic_0001>
module attributes {stable_mosaic.version = 11 : i64} {
  func.func @_scaling_kernel(%arg0: i32, %arg1: memref<6x256xf32, #tpu.memory_space<vmem>>, %arg2: memref<6x1xf32, #tpu.memory_space<vmem>>, %arg3: memref<6x1xf32, #tpu.memory_space<vmem>>, %arg4: memref<6x256xf32, #tpu.memory_space<vmem>>) attributes {dimension_semantics = [#tpu.dimension_semantics<parallel>], iteration_bounds = array<i64: 1>, scalar_prefetch = 0 : i64, scratch_operands = 0 : i64, tpu.core_type = #tpu.core_type<tc>, window_params = [{transform_indices = @transform_0, window_bounds = array<i64: 6, 256>}, {pipeline_mode = #tpu.pipeline_mode<synchronous>, transform_indices = @transform_1, window_bounds = array<i64: 6, 1>}, {pipeline_mode = #tpu.pipeline_mode<synchronous>, transform_indices = @transform_2, window_bounds = array<i64: 6, 1>}, {transform_indices = @transform_3, window_bounds = array<i64: 6, 256>}]} {
    %c0 = arith.constant 0 : index
    %c0_0 = arith.constant 0 : index
    %0 = vector.load %arg1[%c0, %c0_0] : memref<6x256xf32, #tpu.memory_space<vmem>>, vector<6x256xf32>
    %c0_1 = arith.constant 0 : index
    %c0_2 = arith.constant 0 : index
    %1 = vector.load %arg2[%c0_1, %c0_2] : memref<6x1xf32, #tpu.memory_space<vmem>>, vector<6x1xf32>
    %2 = vector.broadcast %1 : vector<6x1xf32> to vector<6x256xf32>
    %3 = arith.subf %0, %2 : vector<6x256xf32>
    %c0_3 = arith.constant 0 : index
    %c0_4 = arith.constant 0 : index
    %4 = vector.load %arg3[%c0_3, %c0_4] : memref<6x1xf32, #tpu.memory_space<vmem>>, vector<6x1xf32>
    %5 = vector.broadcast %4 : vector<6x1xf32> to vector<6x256xf32>
    %6 = arith.mulf %3, %5 : vector<6x256xf32>
    %c0_5 = arith.constant 0 : index
    %c0_6 = arith.constant 0 : index
    %7 = vector.load %arg4[%c0_5, %c0_6] : memref<6x256xf32, #tpu.memory_space<vmem>>, vector<6x256xf32>
    tpu.vector_store %arg4[%c0_5, %c0_6], %6 {strides = array<i32>} : memref<6x256xf32, #tpu.memory_space<vmem>>, vector<6x256xf32>,
    return
  }
  func.func @transform_0(%arg0: i32) -> (i32, i32) {
    %c0_i32 = arith.constant 0 : i32
    %c0_i32_0 = arith.constant 0 : i32
    return %c0_i32, %arg0 : i32, i32
  }
  func.func @transform_1(%arg0: i32) -> (i32, i32) {
    %c0_i32 = arith.constant 0 : i32
    %c0_i32_0 = arith.constant 0 : i32
    %c0_i32_1 = arith.constant 0 : i32
    return %c0_i32, %c0_i32_0 : i32, i32
  }
  func.func @transform_2(%arg0: i32) -> (i32, i32) {
    %c0_i32 = arith.constant 0 : i32
    %c0_i32_0 = arith.constant 0 : i32
    %c0_i32_1 = arith.constant 0 : i32
    return %c0_i32, %c0_i32_0 : i32, i32
  }
  func.func @transform_3(%arg0: i32) -> (i32, i32) {
    %c0_i32 = arith.constant 0 : i32
    %c0_i32_0 = arith.constant 0 : i32
    return %c0_i32, %arg0 : i32, i32
  }
}

</mosaic_0001>

<llo_original>
// kernel: tpu_custom_call.1
$region0: #{tpu_custom_call.1}
  #allocation0 [shape = 'u32[]', space=smem, size = 0x4, offset = 0x4, fixed_abs, tag = 'smem constant byte address 0x4 - core index']
  #allocation1 [shape = 'u32[144,128]{1,0:T(1,128)}', space=vmem, size = 0x12000, scoped, tag = 'internal scratch']
  %s0 = inlined_call_operand.vmem [shape: f32[6,256], index: 0, kind: input, shape index: {}]
  %s1 = inlined_call_operand.vmem [shape: f32[6,1], index: 1, kind: input, shape index: {}]
  %s2 = inlined_call_operand.vmem [shape: f32[6,1], index: 2, kind: input, shape index: {}]
  %s3 = inlined_call_operand.hbm [shape: f32[6,256], index: 3, kind: output, shape index: {}]
  %s4 = sld [smem:[#allocation0]]
  $region22: #{tpu_custom_call.1} parent=0
    _
  %s6 = ssub.s32 1, %s4
  %s7 = scalar_select 0, %s6, %s4
  $region1: #{tpu_custom_call.1} parent=0
    #allocation2 [shape = 'u8[8192]{0}', space=vmem, size = 0x2000, scoped, tag = 'output window, operand 0, single buffered']
    #allocation3 [shape = 's32[1]{0}', space=sflag, size = 0x4, scoped, tag = 'scoped memory for tpu_custom_call.1']
    %8 = vsyncpa [#allocation3], 0
    // Predicated region
    $region2: #{tpu_custom_call.1} parent=1 // pred_check
      _
    $region3: #{tpu_custom_call.1} parent=1 // pred_check_branch
      %10 = sbr.rel (0) target = $region5
    $region4: #{tpu_custom_call.1} parent=1 // pred_region
      _
    $region5: #{tpu_custom_call.1} parent=1 // pred_fallthru
      _
    // Predicated region
    $region6: #{tpu_custom_call.1} parent=1 // pred_check
      _
    $region7: #{tpu_custom_call.1} parent=1 // pred_check_branch
      %12 = sbr.rel (0) target = $region9
    $region8: #{tpu_custom_call.1} parent=1 // pred_region
      _
    $region9: #{tpu_custom_call.1} parent=1 // pred_fallthru
      _
    // Predicated region
    $region10: #{tpu_custom_call.1} parent=1 // pred_check
      _
    $region11: #{tpu_custom_call.1} parent=1 // pred_check_branch
      %14 = sbr.rel (0) target = $region13
    $region12: #{tpu_custom_call.1} parent=1 // pred_region
      _
    $region13: #{tpu_custom_call.1} parent=1 // pred_fallthru
      _
    %v15 = vld [vmem:[%s0] sm:$0x3f]
    %v16 = vld [vmem:[%s0 + $0x8] sm:$0x3f]
    %v17 = vld [vmem:[%s1] sm:$0x3f]
    %19 = vset.pattern.permute.xlu0 0
    %20 = vperm.xlu0 %19, %v17
    %v21 = vpop.permute.xlu0 %20
    %v23 = vsub.f32 %v15, %v21
    %v24 = vsub.f32 %v16, %v21
    %v25 = vld [vmem:[%s2] sm:$0x3f]
    %27 = vset.pattern.permute.xlu0 0
    %28 = vperm.xlu0 %27, %v25
    %v29 = vpop.permute.xlu0 %28
    %v31 = vmul.f32 %v23, %v29
    %v32 = vmul.f32 %v24, %v29
    %33 = vst [vmem:[#allocation2] sm:$0x3f] %v31
    %34 = vst [vmem:[#allocation2 + $0x8] sm:$0x3f] %v32
    // Predicated region
    $region14: #{tpu_custom_call.1} parent=1 // pred_check
      _
    $region15: #{tpu_custom_call.1} parent=1 // pred_check_branch
      %36 = sbr.rel (0) target = $region17
    $region16: #{tpu_custom_call.1} parent=1 // pred_region
      %s38 = ssub.s32 256, 256
      %39 = vsyncadd [#allocation3], %s38
      %s41 = sshll.u32 [#allocation2], 4
      %s42 = int_to_ptr.vmem [resolvable:$true] %s41
      %44 = dma.vmem_to_hbm [thread:$0]  %s42, 256, %s3, [#allocation3]
    $region17: #{tpu_custom_call.1} parent=1 // pred_fallthru
      _
    // Predicated region
    $region18: #{tpu_custom_call.1} parent=1 // pred_check
      _
    $region19: #{tpu_custom_call.1} parent=1 // pred_check_branch
      %46 = sbr.rel (0) target = $region21
    $region20: #{tpu_custom_call.1} parent=1 // pred_region
      %47 = dma.done [#allocation3], 256
    $region21: #{tpu_custom_call.1} parent=1 // pred_fallthru
      _
    %48 = vsyncpa [#allocation3], 1

</llo_original>
